<compile_context>
chip_gen: v7x
topology: tpu7x:2x2x1
jax: 0.10.0
libtpu: 0.0.40
codegen_flags: <defaults>
</compile_context>

<pallas_src>
import functools

import jax
import jax.numpy as jnp
from jax import lax
from jax.experimental import pallas as pl
from jax.experimental.pallas import tpu as pltpu


# ---------------------------------------------------------------------------
# Fused attention kernel for one (batch, query-tile) grid step.
#   x:(N,D) bf16   wq:(D,D) bf16 (scale folded)   wkv:(D,2D) bf16
#   wp:(D,D) bf16  bp:(1,D) f32                   o:(tq,D) f32
#   kv_sc:(N,2D) bf16 scratch (K|V cache)         ctx_sc:(tq,D) bf16 scratch
# ---------------------------------------------------------------------------
def _attention_kernel(x_ref, wq_ref, wkv_ref, wp_ref, bp_ref, o_ref,
                      kv_sc, ctx_sc, *, num_heads, tq):
    qi = pl.program_id(1)
    n_tok, dim = x_ref.shape
    hd = dim // num_heads

    # ---- K/V projection: once per batch row, cached in VMEM (bf16) --------
    @pl.when(qi == 0)
    def _():
        kv = jnp.dot(x_ref[...], wkv_ref[...],
                     preferred_element_type=jnp.float32)          # (N, 2D)
        kv_sc[...] = kv.astype(kv_sc.dtype)

    # ---- Q projection for this query tile (scale already folded in wq) ----
    row0 = pl.multiple_of(qi * tq, tq)
    xq = x_ref[pl.ds(row0, tq), :]                                # (tq, D) bf16
    q = jnp.dot(xq, wq_ref[...],
                preferred_element_type=jnp.float32).astype(jnp.bfloat16)

    # ---- per-head attention; head outputs packed into ctx_sc (tq, D) ------
    for h in range(num_heads):
        q_h = q[:, h * hd:(h + 1) * hd]                           # (tq, hd)
        k_h = kv_sc[:, h * hd:(h + 1) * hd]                       # (N, hd)
        v_h = kv_sc[:, dim + h * hd:dim + (h + 1) * hd]           # (N, hd)

        # scores: contract head_dim without materializing k.T
        s = lax.dot_general(q_h, k_h, (((1,), (1,)), ((), ())),
                            preferred_element_type=jnp.float32)   # (tq, N) f32

        # numerically stable softmax; exp on the EUP; normalization deferred
        m = jnp.max(s, axis=-1, keepdims=True)
        e = jnp.exp(s - m)                                        # (tq, N) f32
        denom = jnp.sum(e, axis=-1, keepdims=True)                # (tq, 1)

        o_h = jnp.dot(e.astype(jnp.bfloat16), v_h,
                      preferred_element_type=jnp.float32)         # (tq, hd)
        o_h = o_h * pl.reciprocal(denom, approx=True)             # deferred norm
        ctx_sc[:, h * hd:(h + 1) * hd] = o_h.astype(ctx_sc.dtype)

    # ---- single full-K output projection + bias ----------------------------
    out = jnp.dot(ctx_sc[...], wp_ref[...],
                  preferred_element_type=jnp.float32) + bp_ref[...]
    o_ref[...] = out.astype(o_ref.dtype)


def _pick_tile(n, preferred=(256, 128, 64, 32, 16, 8)):
    for t in preferred:
        if t <= n and n % t == 0:
            return t
    return n


# ---------------------------------------------------------------------------
# Wrapper: PyTorch-layout params -> fused bf16 weights -> pallas_call.
# ---------------------------------------------------------------------------
def attention_forward(x, params, *, num_heads):
    """x: (B, N, dim).  params: w_qkv (3*dim, dim), w_proj (dim, dim), b_proj (dim,)."""
    B, N, D = x.shape
    assert D % num_heads == 0
    hd = D // num_heads
    scale = hd ** -0.5                       # qk_scale=None -> head_dim ** -0.5

    w_qkv = params["w_qkv"]                  # (3D, D), nn.Linear layout (out, in)
    # Host-side re-layout (free; weights are static).  nn.Linear: y = x @ W.T.
    wq = (w_qkv[0 * D:1 * D].T * scale).astype(jnp.bfloat16)          # (D, D)
    wk = w_qkv[1 * D:2 * D].T
    wv = w_qkv[2 * D:3 * D].T
    wkv = jnp.concatenate([wk, wv], axis=1).astype(jnp.bfloat16)      # (D, 2D)
    wp = params["w_proj"].T.astype(jnp.bfloat16)                      # (D, D)
    bp = params["b_proj"].reshape(1, D).astype(jnp.float32)

    x_bf16 = x.astype(jnp.bfloat16)

    tq = _pick_tile(N)
    nq = N // tq
    kernel = functools.partial(_attention_kernel, num_heads=num_heads, tq=tq)
    const = lambda b, q: (0, 0)              # replicated (VMEM-resident) weights

    out = pl.pallas_call(
        kernel,
        out_shape=jax.ShapeDtypeStruct((B, N, D), jnp.float32),
        grid=(B, nq),
        in_specs=[
            pl.BlockSpec((None, N, D), lambda b, q: (b, 0, 0)),   # x: one batch row
            pl.BlockSpec((D, D), const),                           # wq (scaled)
            pl.BlockSpec((D, 2 * D), const),                       # wkv fused
            pl.BlockSpec((D, D), const),                           # wp
            pl.BlockSpec((1, D), const),                           # proj bias
        ],
        out_specs=pl.BlockSpec((None, tq, D), lambda b, q: (b, q, 0)),
        scratch_shapes=[
            pltpu.VMEM((N, 2 * D), jnp.bfloat16),    # K|V cache (per batch row)
            pltpu.VMEM((tq, D), jnp.bfloat16),       # head-concat context
        ],
        compiler_params=pltpu.CompilerParams(
            dimension_semantics=("parallel", "arbitrary"),
            vmem_limit_bytes=64 * 1024 * 1024),
    )(x_bf16, wq, wkv, wp, bp)
    return out


# ---------------------------------------------------------------------------
# Pure-JAX reference (mirrors the PyTorch forward exactly, p_drop = 0, f32).
# ---------------------------------------------------------------------------
def attention_ref(x, params, *, num_heads):
    B, N, D = x.shape
    hd = D // num_heads
    scale = hd ** -0.5
    qkv = jnp.einsum("bnd,cd->bnc", x, params["w_qkv"])
    qkv = qkv.reshape(B, N, 3, num_heads, hd).transpose(2, 0, 3, 1, 4)
    q, k, v = qkv[0], qkv[1], qkv[2]
    attn = jnp.einsum("bhik,bhjk->bhij", q, k) * scale
    attn = jax.nn.softmax(attn, axis=-1)
    o = jnp.einsum("bhij,bhjk->bhik", attn, v)
    o = o.transpose(0, 2, 1, 3).reshape(B, N, D)
    return jnp.einsum("bnd,cd->bnc", o, params["w_proj"]) + params["b_proj"]


if __name__ == "__main__":
    # Small shapes consistent with the module: B=2, seq N=8, dim=32, 4 heads.
    B, N, D, H = 2, 8, 32, 4

    key = jax.random.PRNGKey(0)
    kx, kq, kp, kb = jax.random.split(key, 4)
    wstd = 1.0 / jnp.sqrt(jnp.float32(D))
    x = jax.random.normal(kx, (B, N, D), jnp.float32)
    params = {
        "w_qkv": wstd * jax.random.normal(kq, (3 * D, D), jnp.float32),
        "w_proj": wstd * jax.random.normal(kp, (D, D), jnp.float32),
        "b_proj": 0.01 * jax.random.normal(kb, (D,), jnp.float32),
    }

    fwd = jax.jit(functools.partial(attention_forward, num_heads=H))
    out = jax.block_until_ready(fwd(x, params))

    ref = attention_ref(x, params, num_heads=H)
    assert out.shape == (B, N, D), out.shape
    assert bool(jnp.all(jnp.isfinite(out)))
    # bf16 matmul operands + approx (EUP) reciprocal -> loose tolerance vs f32 ref
    assert bool(jnp.allclose(out, ref, rtol=5e-2, atol=5e-2)), \
        float(jnp.max(jnp.abs(out - ref)))
    print("KERNEL_OK")
</pallas_src>

<mosaic_0001>
module attributes {stable_mosaic.version = 11 : i64} {
  func.func @_attention_kernel(%arg0: i32, %arg1: i32, %arg2: memref<1x8x32xbf16, #tpu.memory_space<vmem>>, %arg3: memref<32x32xbf16, #tpu.memory_space<vmem>>, %arg4: memref<32x64xbf16, #tpu.memory_space<vmem>>, %arg5: memref<32x32xbf16, #tpu.memory_space<vmem>>, %arg6: memref<1x32xf32, #tpu.memory_space<vmem>>, %arg7: memref<1x8x32xf32, #tpu.memory_space<vmem>>, %arg8: memref<8x64xbf16, #tpu.memory_space<vmem>>, %arg9: memref<8x32xbf16, #tpu.memory_space<vmem>>) attributes {dimension_semantics = [#tpu.dimension_semantics<parallel>, #tpu.dimension_semantics<arbitrary>], iteration_bounds = array<i64: 2, 1>, scalar_prefetch = 0 : i64, scratch_operands = 2 : i64, tpu.core_type = #tpu.core_type<tc>, window_params = [{transform_indices = @transform_0, window_bounds = array<i64: 1, 8, 32>}, {pipeline_mode = #tpu.pipeline_mode<synchronous>, transform_indices = @transform_1, window_bounds = array<i64: 32, 32>}, {pipeline_mode = #tpu.pipeline_mode<synchronous>, transform_indices = @transform_2, window_bounds = array<i64: 32, 64>}, {pipeline_mode = #tpu.pipeline_mode<synchronous>, transform_indices = @transform_3, window_bounds = array<i64: 32, 32>}, {pipeline_mode = #tpu.pipeline_mode<synchronous>, transform_indices = @transform_4, window_bounds = array<i64: 1, 32>}, {transform_indices = @transform_5, window_bounds = array<i64: 1, 8, 32>}]} {
    %c0_i32 = arith.constant 0 : i32
    %0 = arith.cmpi eq, %arg1, %c0_i32 : i32
    %1 = arith.extui %0 : i1 to i32
    %c0_i32_0 = arith.constant 0 : i32
    %2 = arith.cmpi ne, %1, %c0_i32_0 : i32
    scf.if %2 {
      %c0_47 = arith.constant 0 : index
      %c0_48 = arith.constant 0 : index
      %c0_49 = arith.constant 0 : index
      %92 = vector.load %arg2[%c0_47, %c0_48, %c0_49] : memref<1x8x32xbf16, #tpu.memory_space<vmem>>, vector<1x8x32xbf16>
      %93 = vector.shape_cast %92 : vector<1x8x32xbf16> to vector<8x32xbf16>
      %c0_50 = arith.constant 0 : index
      %c0_51 = arith.constant 0 : index
      %94 = vector.load %arg4[%c0_50, %c0_51] : memref<32x64xbf16, #tpu.memory_space<vmem>>, vector<32x64xbf16>
      %cst_52 = arith.constant dense<0.000000e+00> : vector<8x64xf32>
      %95 = tpu.matmul %93, %94, %cst_52 {dimension_numbers = #tpu.dot_dimension_numbers<[1], [0], [0], [1], [0, 0, 1, 1], [], []>} : vector<8x32xbf16>, vector<32x64xbf16>, vector<8x64xf32> -> vector<8x64xf32>
      %96 = arith.truncf %95 : vector<8x64xf32> to vector<8x64xbf16>
      %c0_53 = arith.constant 0 : index
      %c0_54 = arith.constant 0 : index
      %97 = vector.load %arg8[%c0_53, %c0_54] : memref<8x64xbf16, #tpu.memory_space<vmem>>, vector<8x64xbf16>
      tpu.vector_store %arg8[%c0_53, %c0_54], %96 {strides = array<i32>} : memref<8x64xbf16, #tpu.memory_space<vmem>>, vector<8x64xbf16>,
    } else {
    }
    %c8_i32 = arith.constant 8 : i32
    %3 = arith.muli %arg1, %c8_i32 : i32
    %4 = tpu.assume_multiple %3, 8 : i32
    %c0 = arith.constant 0 : index
    %5 = arith.index_cast %4 : i32 to index
    %c0_1 = arith.constant 0 : index
    %6 = vector.load %arg2[%c0, %5, %c0_1] : memref<1x8x32xbf16, #tpu.memory_space<vmem>>, vector<1x8x32xbf16>
    %7 = vector.shape_cast %6 : vector<1x8x32xbf16> to vector<8x32xbf16>
    %c0_2 = arith.constant 0 : index
    %c0_3 = arith.constant 0 : index
    %8 = vector.load %arg3[%c0_2, %c0_3] : memref<32x32xbf16, #tpu.memory_space<vmem>>, vector<32x32xbf16>
    %cst = arith.constant dense<0.000000e+00> : vector<8x32xf32>
    %9 = tpu.matmul %7, %8, %cst {dimension_numbers = #tpu.dot_dimension_numbers<[1], [0], [0], [1], [0, 0, 1, 1], [], []>} : vector<8x32xbf16>, vector<32x32xbf16>, vector<8x32xf32> -> vector<8x32xf32>
    %10 = arith.truncf %9 : vector<8x32xf32> to vector<8x32xbf16>
    %11 = vector.extract_strided_slice %10 {offsets = [0, 0], sizes = [8, 8], strides = [1, 1]} : vector<8x32xbf16> to vector<8x8xbf16>
    %c0_4 = arith.constant 0 : index
    %c0_5 = arith.constant 0 : index
    %12 = vector.load %arg8[%c0_4, %c0_5] : memref<8x64xbf16, #tpu.memory_space<vmem>>, vector<8x8xbf16>
    %c0_6 = arith.constant 0 : index
    %c32 = arith.constant 32 : index
    %13 = vector.load %arg8[%c0_6, %c32] : memref<8x64xbf16, #tpu.memory_space<vmem>>, vector<8x8xbf16>
    %cst_7 = arith.constant dense<0.000000e+00> : vector<8x8xf32>
    %14 = tpu.matmul %11, %12, %cst_7 {dimension_numbers = #tpu.dot_dimension_numbers<[1], [1], [0], [0], [0, 0, 1, 0], [], []>} : vector<8x8xbf16>, vector<8x8xbf16>, vector<8x8xf32> -> vector<8x8xf32>
    %cst_8 = arith.constant dense<0xFF800000> : vector<8xf32>
    %15 = vector.multi_reduction <maximumf>, %14, %cst_8 [1] : vector<8x8xf32> to vector<8xf32>
    %16 = vector.shape_cast %15 : vector<8xf32> to vector<8x1xf32>
    %17 = vector.broadcast %16 : vector<8x1xf32> to vector<8x8xf32>
    %18 = arith.subf %14, %17 : vector<8x8xf32>
    %19 = math.exp %18 : vector<8x8xf32>
    %cst_9 = arith.constant dense<0.000000e+00> : vector<8xf32>
    %20 = vector.multi_reduction <add>, %19, %cst_9 [1] : vector<8x8xf32> to vector<8xf32>
    %21 = vector.shape_cast %20 : vector<8xf32> to vector<8x1xf32>
    %22 = arith.truncf %19 : vector<8x8xf32> to vector<8x8xbf16>
    %cst_10 = arith.constant dense<0.000000e+00> : vector<8x8xf32>
    %23 = tpu.matmul %22, %13, %cst_10 {dimension_numbers = #tpu.dot_dimension_numbers<[1], [0], [0], [1], [0, 0, 1, 1], [], []>} : vector<8x8xbf16>, vector<8x8xbf16>, vector<8x8xf32> -> vector<8x8xf32>
    %24 = tpu.reciprocal %21 {approx = true} : vector<8x1xf32> -> vector<8x1xf32>
    %25 = vector.broadcast %24 : vector<8x1xf32> to vector<8x8xf32>
    %26 = arith.mulf %23, %25 : vector<8x8xf32>
    %27 = arith.truncf %26 : vector<8x8xf32> to vector<8x8xbf16>
    %c0_11 = arith.constant 0 : index
    %c0_12 = arith.constant 0 : index
    %28 = vector.load %arg9[%c0_11, %c0_12] : memref<8x32xbf16, #tpu.memory_space<vmem>>, vector<8x8xbf16>
    tpu.vector_store %arg9[%c0_11, %c0_12], %27 {strides = array<i32>} : memref<8x32xbf16, #tpu.memory_space<vmem>>, vector<8x8xbf16>,
    %29 = vector.extract_strided_slice %10 {offsets = [0, 8], sizes = [8, 8], strides = [1, 1]} : vector<8x32xbf16> to vector<8x8xbf16>
    %c0_13 = arith.constant 0 : index
    %c8 = arith.constant 8 : index
    %30 = vector.load %arg8[%c0_13, %c8] : memref<8x64xbf16, #tpu.memory_space<vmem>>, vector<8x8xbf16>
    %c0_14 = arith.constant 0 : index
    %c40 = arith.constant 40 : index
    %31 = vector.load %arg8[%c0_14, %c40] : memref<8x64xbf16, #tpu.memory_space<vmem>>, vector<8x8xbf16>
    %cst_15 = arith.constant dense<0.000000e+00> : vector<8x8xf32>
    %32 = tpu.matmul %29, %30, %cst_15 {dimension_numbers = #tpu.dot_dimension_numbers<[1], [1], [0], [0], [0, 0, 1, 0], [], []>} : vector<8x8xbf16>, vector<8x8xbf16>, vector<8x8xf32> -> vector<8x8xf32>
    %cst_16 = arith.constant dense<0xFF800000> : vector<8xf32>
    %33 = vector.multi_reduction <maximumf>, %32, %cst_16 [1] : vector<8x8xf32> to vector<8xf32>
    %34 = vector.shape_cast %33 : vector<8xf32> to vector<8x1xf32>
    %35 = vector.broadcast %34 : vector<8x1xf32> to vector<8x8xf32>
    %36 = arith.subf %32, %35 : vector<8x8xf32>
    %37 = math.exp %36 : vector<8x8xf32>
    %cst_17 = arith.constant dense<0.000000e+00> : vector<8xf32>
    %38 = vector.multi_reduction <add>, %37, %cst_17 [1] : vector<8x8xf32> to vector<8xf32>
    %39 = vector.shape_cast %38 : vector<8xf32> to vector<8x1xf32>
    %40 = arith.truncf %37 : vector<8x8xf32> to vector<8x8xbf16>
    %cst_18 = arith.constant dense<0.000000e+00> : vector<8x8xf32>
    %41 = tpu.matmul %40, %31, %cst_18 {dimension_numbers = #tpu.dot_dimension_numbers<[1], [0], [0], [1], [0, 0, 1, 1], [], []>} : vector<8x8xbf16>, vector<8x8xbf16>, vector<8x8xf32> -> vector<8x8xf32>
    %42 = tpu.reciprocal %39 {approx = true} : vector<8x1xf32> -> vector<8x1xf32>
    %43 = vector.broadcast %42 : vector<8x1xf32> to vector<8x8xf32>
    %44 = arith.mulf %41, %43 : vector<8x8xf32>
    %45 = arith.truncf %44 : vector<8x8xf32> to vector<8x8xbf16>
    %c0_19 = arith.constant 0 : index
    %c8_20 = arith.constant 8 : index
    %46 = vector.load %arg9[%c0_19, %c8_20] : memref<8x32xbf16, #tpu.memory_space<vmem>>, vector<8x8xbf16>
    tpu.vector_store %arg9[%c0_19, %c8_20], %45 {strides = array<i32>} : memref<8x32xbf16, #tpu.memory_space<vmem>>, vector<8x8xbf16>,
    %47 = vector.extract_strided_slice %10 {offsets = [0, 16], sizes = [8, 8], strides = [1, 1]} : vector<8x32xbf16> to vector<8x8xbf16>
    %c0_21 = arith.constant 0 : index
    %c16 = arith.constant 16 : index
    %48 = vector.load %arg8[%c0_21, %c16] : memref<8x64xbf16, #tpu.memory_space<vmem>>, vector<8x8xbf16>
    %c0_22 = arith.constant 0 : index
    %c48 = arith.constant 48 : index
    %49 = vector.load %arg8[%c0_22, %c48] : memref<8x64xbf16, #tpu.memory_space<vmem>>, vector<8x8xbf16>
    %cst_23 = arith.constant dense<0.000000e+00> : vector<8x8xf32>
    %50 = tpu.matmul %47, %48, %cst_23 {dimension_numbers = #tpu.dot_dimension_numbers<[1], [1], [0], [0], [0, 0, 1, 0], [], []>} : vector<8x8xbf16>, vector<8x8xbf16>, vector<8x8xf32> -> vector<8x8xf32>
    %cst_24 = arith.constant dense<0xFF800000> : vector<8xf32>
    %51 = vector.multi_reduction <maximumf>, %50, %cst_24 [1] : vector<8x8xf32> to vector<8xf32>
    %52 = vector.shape_cast %51 : vector<8xf32> to vector<8x1xf32>
    %53 = vector.broadcast %52 : vector<8x1xf32> to vector<8x8xf32>
    %54 = arith.subf %50, %53 : vector<8x8xf32>
    %55 = math.exp %54 : vector<8x8xf32>
    %cst_25 = arith.constant dense<0.000000e+00> : vector<8xf32>
    %56 = vector.multi_reduction <add>, %55, %cst_25 [1] : vector<8x8xf32> to vector<8xf32>
    %57 = vector.shape_cast %56 : vector<8xf32> to vector<8x1xf32>
    %58 = arith.truncf %55 : vector<8x8xf32> to vector<8x8xbf16>
    %cst_26 = arith.constant dense<0.000000e+00> : vector<8x8xf32>
    %59 = tpu.matmul %58, %49, %cst_26 {dimension_numbers = #tpu.dot_dimension_numbers<[1], [0], [0], [1], [0, 0, 1, 1], [], []>} : vector<8x8xbf16>, vector<8x8xbf16>, vector<8x8xf32> -> vector<8x8xf32>
    %60 = tpu.reciprocal %57 {approx = true} : vector<8x1xf32> -> vector<8x1xf32>
    %61 = vector.broadcast %60 : vector<8x1xf32> to vector<8x8xf32>
    %62 = arith.mulf %59, %61 : vector<8x8xf32>
    %63 = arith.truncf %62 : vector<8x8xf32> to vector<8x8xbf16>
    %c0_27 = arith.constant 0 : index
    %c16_28 = arith.constant 16 : index
    %64 = vector.load %arg9[%c0_27, %c16_28] : memref<8x32xbf16, #tpu.memory_space<vmem>>, vector<8x8xbf16>
    tpu.vector_store %arg9[%c0_27, %c16_28], %63 {strides = array<i32>} : memref<8x32xbf16, #tpu.memory_space<vmem>>, vector<8x8xbf16>,
    %65 = vector.extract_strided_slice %10 {offsets = [0, 24], sizes = [8, 8], strides = [1, 1]} : vector<8x32xbf16> to vector<8x8xbf16>
    %c0_29 = arith.constant 0 : index
    %c24 = arith.constant 24 : index
    %66 = vector.load %arg8[%c0_29, %c24] : memref<8x64xbf16, #tpu.memory_space<vmem>>, vector<8x8xbf16>
    %c0_30 = arith.constant 0 : index
    %c56 = arith.constant 56 : index
    %67 = vector.load %arg8[%c0_30, %c56] : memref<8x64xbf16, #tpu.memory_space<vmem>>, vector<8x8xbf16>
    %cst_31 = arith.constant dense<0.000000e+00> : vector<8x8xf32>
    %68 = tpu.matmul %65, %66, %cst_31 {dimension_numbers = #tpu.dot_dimension_numbers<[1], [1], [0], [0], [0, 0, 1, 0], [], []>} : vector<8x8xbf16>, vector<8x8xbf16>, vector<8x8xf32> -> vector<8x8xf32>
    %cst_32 = arith.constant dense<0xFF800000> : vector<8xf32>
    %69 = vector.multi_reduction <maximumf>, %68, %cst_32 [1] : vector<8x8xf32> to vector<8xf32>
    %70 = vector.shape_cast %69 : vector<8xf32> to vector<8x1xf32>
    %71 = vector.broadcast %70 : vector<8x1xf32> to vector<8x8xf32>
    %72 = arith.subf %68, %71 : vector<8x8xf32>
    %73 = math.exp %72 : vector<8x8xf32>
    %cst_33 = arith.constant dense<0.000000e+00> : vector<8xf32>
    %74 = vector.multi_reduction <add>, %73, %cst_33 [1] : vector<8x8xf32> to vector<8xf32>
    %75 = vector.shape_cast %74 : vector<8xf32> to vector<8x1xf32>
    %76 = arith.truncf %73 : vector<8x8xf32> to vector<8x8xbf16>
    %cst_34 = arith.constant dense<0.000000e+00> : vector<8x8xf32>
    %77 = tpu.matmul %76, %67, %cst_34 {dimension_numbers = #tpu.dot_dimension_numbers<[1], [0], [0], [1], [0, 0, 1, 1], [], []>} : vector<8x8xbf16>, vector<8x8xbf16>, vector<8x8xf32> -> vector<8x8xf32>
    %78 = tpu.reciprocal %75 {approx = true} : vector<8x1xf32> -> vector<8x1xf32>
    %79 = vector.broadcast %78 : vector<8x1xf32> to vector<8x8xf32>
    %80 = arith.mulf %77, %79 : vector<8x8xf32>
    %81 = arith.truncf %80 : vector<8x8xf32> to vector<8x8xbf16>
    %c0_35 = arith.constant 0 : index
    %c24_36 = arith.constant 24 : index
    %82 = vector.load %arg9[%c0_35, %c24_36] : memref<8x32xbf16, #tpu.memory_space<vmem>>, vector<8x8xbf16>
    tpu.vector_store %arg9[%c0_35, %c24_36], %81 {strides = array<i32>} : memref<8x32xbf16, #tpu.memory_space<vmem>>, vector<8x8xbf16>,
    %c0_37 = arith.constant 0 : index
    %c0_38 = arith.constant 0 : index
    %83 = vector.load %arg9[%c0_37, %c0_38] : memref<8x32xbf16, #tpu.memory_space<vmem>>, vector<8x32xbf16>
    %c0_39 = arith.constant 0 : index
    %c0_40 = arith.constant 0 : index
    %84 = vector.load %arg5[%c0_39, %c0_40] : memref<32x32xbf16, #tpu.memory_space<vmem>>, vector<32x32xbf16>
    %cst_41 = arith.constant dense<0.000000e+00> : vector<8x32xf32>
    %85 = tpu.matmul %83, %84, %cst_41 {dimension_numbers = #tpu.dot_dimension_numbers<[1], [0], [0], [1], [0, 0, 1, 1], [], []>} : vector<8x32xbf16>, vector<32x32xbf16>, vector<8x32xf32> -> vector<8x32xf32>
    %c0_42 = arith.constant 0 : index
    %c0_43 = arith.constant 0 : index
    %86 = vector.load %arg6[%c0_42, %c0_43] : memref<1x32xf32, #tpu.memory_space<vmem>>, vector<1x32xf32>
    %87 = vector.broadcast %86 : vector<1x32xf32> to vector<8x32xf32>
    %88 = arith.addf %85, %87 : vector<8x32xf32>
    %c0_44 = arith.constant 0 : index
    %c0_45 = arith.constant 0 : index
    %c0_46 = arith.constant 0 : index
    %89 = vector.load %arg7[%c0_44, %c0_45, %c0_46] : memref<1x8x32xf32, #tpu.memory_space<vmem>>, vector<1x8x32xf32>
    %90 = vector.shape_cast %89 : vector<1x8x32xf32> to vector<8x32xf32>
    %91 = vector.shape_cast %88 : vector<8x32xf32> to vector<1x8x32xf32>
    tpu.vector_store %arg7[%c0_44, %c0_45, %c0_46], %91 {strides = array<i32>} : memref<1x8x32xf32, #tpu.memory_space<vmem>>, vector<1x8x32xf32>,
    return
  }
  func.func @transform_0(%arg0: i32, %arg1: i32) -> (i32, i32, i32) {
    %c0_i32 = arith.constant 0 : i32
    %c0_i32_0 = arith.constant 0 : i32
    %c0_i32_1 = arith.constant 0 : i32
    return %arg0, %c0_i32, %c0_i32_0 : i32, i32, i32
  }
  func.func @transform_1(%arg0: i32, %arg1: i32) -> (i32, i32) {
    %c0_i32 = arith.constant 0 : i32
    %c0_i32_0 = arith.constant 0 : i32
    %c0_i32_1 = arith.constant 0 : i32
    return %c0_i32, %c0_i32_0 : i32, i32
  }
  func.func @transform_2(%arg0: i32, %arg1: i32) -> (i32, i32) {
    %c0_i32 = arith.constant 0 : i32
    %c0_i32_0 = arith.constant 0 : i32
    %c0_i32_1 = arith.constant 0 : i32
    return %c0_i32, %c0_i32_0 : i32, i32
  }
  func.func @transform_3(%arg0: i32, %arg1: i32) -> (i32, i32) {
    %c0_i32 = arith.constant 0 : i32
    %c0_i32_0 = arith.constant 0 : i32
    %c0_i32_1 = arith.constant 0 : i32
    return %c0_i32, %c0_i32_0 : i32, i32
  }
  func.func @transform_4(%arg0: i32, %arg1: i32) -> (i32, i32) {
    %c0_i32 = arith.constant 0 : i32
    %c0_i32_0 = arith.constant 0 : i32
    %c0_i32_1 = arith.constant 0 : i32
    return %c0_i32, %c0_i32_0 : i32, i32
  }
  func.func @transform_5(%arg0: i32, %arg1: i32) -> (i32, i32, i32) {
    %c0_i32 = arith.constant 0 : i32
    %c0_i32_0 = arith.constant 0 : i32
    return %arg0, %arg1, %c0_i32 : i32, i32, i32
  }
}

</mosaic_0001>

<llo_original>
// kernel: attention_forward.1
$region0: #{attention_forward.1}
  #allocation0 [shape = 'u32[]', space=smem, size = 0x4, offset = 0x4, fixed_abs, tag = 'smem constant byte address 0x4 - core index']
  #allocation1 [shape = 'u32[144,128]{1,0:T(1,128)}', space=vmem, size = 0x12000, scoped, tag = 'internal scratch']
  #allocation2 [shape = 'bf16[8,64]{1,0:T(8,128)(2,1)}', space=vmem, size = 0x800, scoped, tag = 'scratch operand']
  #allocation3 [shape = 'bf16[8,32]{1,0:T(8,128)(2,1)}', space=vmem, size = 0x800, scoped, tag = 'scratch operand']
  %s0 = inlined_call_operand.hbm [shape: bf16[2,8,32], index: 0, kind: input, shape index: {}]
  %s1 = inlined_call_operand.hbm [shape: bf16[32,32], index: 1, kind: input, shape index: {}]
  %s2 = inlined_call_operand.hbm [shape: bf16[32,64], index: 2, kind: input, shape index: {}]
  %s3 = inlined_call_operand.hbm [shape: bf16[32,32], index: 3, kind: input, shape index: {}]
  %s4 = inlined_call_operand.hbm [shape: f32[1,32], index: 4, kind: input, shape index: {}]
  %s5 = inlined_call_operand.hbm [shape: f32[2,8,32], index: 5, kind: output, shape index: {}]
  %s6 = sld [smem:[#allocation0]]
  $region77: #{attention_forward.1} parent=0
    _
  %s8 = ssub.s32 1, %s6
  %s9 = scalar_select 0, %s8, %s6
  $region1: #{attention_forward.1} parent=0
    #allocation4 [shape = 'u8[4096]{0}', space=vmem, size = 0x1000, scoped, tag = 'input window, operand 0']
    #allocation5 [shape = 's32[2]{0}', space=sflag, size = 0x8, scoped, tag = 'scoped memory for attention_forward.1']
    #allocation6 [shape = 's32[2]{0}', space=sflag, size = 0x8, scoped, tag = 'scoped memory for attention_forward.1']
    #allocation7 [shape = 'u8[8192]{0}', space=vmem, size = 0x2000, scoped, tag = 'input window, operand 1, single buffered']
    #allocation8 [shape = 's32[1]{0}', space=sflag, size = 0x4, scoped, tag = 'scoped memory for attention_forward.1']
    #allocation9 [shape = 'u8[8192]{0}', space=vmem, size = 0x2000, scoped, tag = 'input window, operand 2, single buffered']
    #allocation10 [shape = 'u8[8192]{0}', space=vmem, size = 0x2000, scoped, tag = 'input window, operand 3, single buffered']
    #allocation11 [shape = 's32[1]{0}', space=sflag, size = 0x4, scoped, tag = 'scoped memory for attention_forward.1']
    #allocation12 [shape = 'u8[512]{0}', space=vmem, size = 0x400, scoped, tag = 'input window, operand 4, single buffered']
    #allocation13 [shape = 'u8[8192]{0}', space=vmem, size = 0x2000, scoped, tag = 'output window, operand 0']
    %10 = vsyncpa [#allocation5], 0
    %s11 = scalar_lea.sflag [#allocation5], 1
    %12 = vsyncpa %s11, 0
    %13 = vsyncpa [#allocation8], 0
    %14 = vsyncpa [#allocation11], 0
    %15 = vsyncpa [#allocation6], 0
    %s16 = scalar_lea.sflag [#allocation6], 1
    %17 = vsyncpa %s16, 0
    loop: start=0, step=1, limit=4
    $region2: #{attention_forward.1} parent=1 // loop_pre_header
      _
    $region3: #{attention_forward.1} parent=1 // loop_header
      %s19 = sphi 0, %s23
      %p20 = scmp.ge.s32.totalorder %s19, 4
      %s26 = sphi 0, %s38
      %s27 = sphi 0, %s34
      %s28 = sphi 0, %s26
      %s29 = sphi 0, %s27
      %s30 = sphi 0, %s28
      %s31 = sphi 0, %s29
      %s41 = sphi 0, %s43
      %s44 = sphi 0, %s41
      %s45 = sphi 0, %s44
      %s61 = sphi 0, %s45
      %s65 = sphi 0, %s65
      %s67 = sphi 0, %s65
      %s68 = sphi 0, %s67
      %s82 = sphi 0, %s68
      %s86 = sphi 0, %s86
      %s88 = sphi 0, %s86
      %s89 = sphi 0, %s88
      %s103 = sphi 0, %s89
      %s107 = sphi 0, %s107
      %s109 = sphi 0, %s107
      %s110 = sphi 0, %s109
      %s124 = sphi 0, %s110
      %s128 = sphi 0, %s128
      %s130 = sphi 0, %s128
      %s131 = sphi 0, %s130
      %s145 = sphi 0, %s131
      %s153 = sphi 0, %s155
      %s156 = sphi 0, %s153
      %s157 = sphi 0, %s156
      %s173 = sphi 0, %s157
    $region4: #{attention_forward.1} parent=1 // loop_header_branch
      %22 = sbr.rel (%p20) target = $region8
    $region5: #{attention_forward.1} parent=1 // loop_body
      %s24 = ssub.s32 %s19, 1
      %s25 = ssub.s32 %s19, 2
      %s32 = sadd.s32 1, %s27
      %p33 = scmp.ge.s32.totalorder %s32, 1
      %s34 = scalar_select %p33, 0, %s32
      %s35 = sadd.s32 1, %s26
      %s36 = scalar_select %p33, %s35, %s26
      %p37 = scmp.ge.s32.totalorder %s36, 2
      %s38 = scalar_select %p37, 0, %s36
      %s39 = ssub.s32 %s26, %s38
      %p40 = scmp.eq.s32.totalorder %s39, 0
      %s42 = sadd.s32 %s41, 1
      %s43 = scalar_select %p40, %s41, %s42
      %p46 = pneg %p40
      %p47 = scmp.eq.s32.totalorder %s19, 1
      %p48 = por %p46, %p47
      %p49 = scmp.ne.s32.totalorder %s41, %s44
      %p50 = scmp.eq.s32.totalorder %s19, 0
      %p51 = por %p49, %p50
      %p52 = scmp.ne.s32.totalorder %s41, %s44
      %p53 = scmp.eq.s32.totalorder %s24, 1
      %p54 = por %p52, %p53
      %p55 = scmp.ne.s32.totalorder %s44, %s45
      %p56 = scmp.eq.s32.totalorder %s24, 0
      %p57 = por %p55, %p56
      %p58 = scmp.ne.s32.totalorder %s44, %s45
      %p59 = scmp.eq.s32.totalorder %s25, 1
      %p60 = por %p58, %p59
      %p62 = scmp.ne.s32.totalorder %s45, %s61
      %p63 = scmp.eq.s32.totalorder %s25, 0
      %p64 = por %p62, %p63
      %s66 = sadd.s32 %s65, 1
      %p69 = scmp.eq.s32.totalorder %s19, 1
      %p70 = scmp.ne.s32.totalorder %s65, %s67
      %p71 = scmp.eq.s32.totalorder %s19, 0
      %p72 = por %p70, %p71
      %p73 = scmp.ne.s32.totalorder %s65, %s67
      %p74 = scmp.eq.s32.totalorder %s24, 1
      %p75 = por %p73, %p74
      %p76 = scmp.ne.s32.totalorder %s67, %s68
      %p77 = scmp.eq.s32.totalorder %s24, 0
      %p78 = por %p76, %p77
      %p79 = scmp.ne.s32.totalorder %s67, %s68
      %p80 = scmp.eq.s32.totalorder %s25, 1
      %p81 = por %p79, %p80
      %p83 = scmp.ne.s32.totalorder %s68, %s82
      %p84 = scmp.eq.s32.totalorder %s25, 0
      %p85 = por %p83, %p84
      %s87 = sadd.s32 %s86, 1
      %p90 = scmp.eq.s32.totalorder %s19, 1
      %p91 = scmp.ne.s32.totalorder %s86, %s88
      %p92 = scmp.eq.s32.totalorder %s19, 0
      %p93 = por %p91, %p92
      %p94 = scmp.ne.s32.totalorder %s86, %s88
      %p95 = scmp.eq.s32.totalorder %s24, 1
      %p96 = por %p94, %p95
      %p97 = scmp.ne.s32.totalorder %s88, %s89
      %p98 = scmp.eq.s32.totalorder %s24, 0
      %p99 = por %p97, %p98
      %p100 = scmp.ne.s32.totalorder %s88, %s89
      %p101 = scmp.eq.s32.totalorder %s25, 1
      %p102 = por %p100, %p101
      %p104 = scmp.ne.s32.totalorder %s89, %s103
      %p105 = scmp.eq.s32.totalorder %s25, 0
      %p106 = por %p104, %p105
      %s108 = sadd.s32 %s107, 1
      %p111 = scmp.eq.s32.totalorder %s19, 1
      %p112 = scmp.ne.s32.totalorder %s107, %s109
      %p113 = scmp.eq.s32.totalorder %s19, 0
      %p114 = por %p112, %p113
      %p115 = scmp.ne.s32.totalorder %s107, %s109
      %p116 = scmp.eq.s32.totalorder %s24, 1
      %p117 = por %p115, %p116
      %p118 = scmp.ne.s32.totalorder %s109, %s110
      %p119 = scmp.eq.s32.totalorder %s24, 0
      %p120 = por %p118, %p119
      %p121 = scmp.ne.s32.totalorder %s109, %s110
      %p122 = scmp.eq.s32.totalorder %s25, 1
      %p123 = por %p121, %p122
      %p125 = scmp.ne.s32.totalorder %s110, %s124
      %p126 = scmp.eq.s32.totalorder %s25, 0
      %p127 = por %p125, %p126
      %s129 = sadd.s32 %s128, 1
      %p132 = scmp.eq.s32.totalorder %s19, 1
      %p133 = scmp.ne.s32.totalorder %s128, %s130
      %p134 = scmp.eq.s32.totalorder %s19, 0
      %p135 = por %p133, %p134
      %p136 = scmp.ne.s32.totalorder %s128, %s130
      %p137 = scmp.eq.s32.totalorder %s24, 1
      %p138 = por %p136, %p137
      %p139 = scmp.ne.s32.totalorder %s130, %s131
      %p140 = scmp.eq.s32.totalorder %s24, 0
      %p141 = por %p139, %p140
      %p142 = scmp.ne.s32.totalorder %s130, %s131
      %p143 = scmp.eq.s32.totalorder %s25, 1
      %p144 = por %p142, %p143
      %p146 = scmp.ne.s32.totalorder %s131, %s145
      %p147 = scmp.eq.s32.totalorder %s25, 0
      %p148 = por %p146, %p147
      %s149 = ssub.s32 %s26, %s38
      %s150 = ssub.s32 %s27, %s34
      %s151 = sor.u32 %s149, %s150
      %p152 = scmp.eq.s32.totalorder %s151, 0
      %s154 = sadd.s32 %s153, 1
      %s155 = scalar_select %p152, %s153, %s154
      %p158 = pneg %p152
      %p159 = scmp.eq.s32.totalorder %s19, 1
      %p160 = por %p158, %p159
      %p161 = scmp.ne.s32.totalorder %s153, %s156
      %p162 = scmp.eq.s32.totalorder %s19, 0
      %p163 = por %p161, %p162
      %p164 = scmp.ne.s32.totalorder %s153, %s156
      %p165 = scmp.eq.s32.totalorder %s24, 1
      %p166 = por %p164, %p165
      %p167 = scmp.ne.s32.totalorder %s156, %s157
      %p168 = scmp.eq.s32.totalorder %s24, 0
      %p169 = por %p167, %p168
      %p170 = scmp.ne.s32.totalorder %s156, %s157
      %p171 = scmp.eq.s32.totalorder %s25, 1
      %p172 = por %p170, %p171
      %p174 = scmp.ne.s32.totalorder %s157, %s173
      %p175 = scmp.eq.s32.totalorder %s25, 0
      %p176 = por %p174, %p175
      %p177 = scmp.le.s32.totalorder 1, %s19
      %p178 = scmp.lt.s32.totalorder %s19, 3
      %p179 = pnand %p177, %p178
      %p180 = pneg %p179
      // Predicated region
      $region9: #{attention_forward.1} parent=5 // pred_check
        _
      $region10: #{attention_forward.1} parent=5 // pred_check_branch
        %182 = sbr.rel (%p179) target = $region12
      $region11: #{attention_forward.1} parent=5 // pred_region
        %s183 = ssub.s32 %s19, 1
        // Predicated region
        $region13: #{attention_forward.1} parent=11 // pred_check
          %p184 = pneg %p78
        $region14: #{attention_forward.1} parent=11 // pred_check_branch
          %186 = sbr.rel (%p184) target = $region16
        $region15: #{attention_forward.1} parent=11 // pred_region
          %s188 = ssub.s32 256, 256
          %189 = vsyncadd [#allocation8], %s188
          %s190 = sshll.u32 [#allocation7], 4
          %s191 = int_to_ptr.vmem [resolvable:$true] %s190
          %196 = dma.hbm_to_vmem [thread:$0]  %s1, 256, %s191, [#allocation8], 64, 64, 4
        $region16: #{attention_forward.1} parent=11 // pred_fallthru
          _
        // Predicated region
        $region17: #{attention_forward.1} parent=11 // pred_check
          %p197 = pneg %p99
        $region18: #{attention_forward.1} parent=11 // pred_check_branch
          %199 = sbr.rel (%p197) target = $region20
        $region19: #{attention_forward.1} parent=11 // pred_region
          %s201 = ssub.s32 256, 256
          %202 = vsyncadd [#allocation8], %s201
          %s203 = sshll.u32 [#allocation9], 4
          %s204 = int_to_ptr.vmem [resolvable:$true] %s203
          %209 = dma.hbm_to_vmem [thread:$0]  %s2, 256, %s204, [#allocation8], 64, 64, 4
        $region20: #{attention_forward.1} parent=11 // pred_fallthru
          _
        // Predicated region
        $region21: #{attention_forward.1} parent=11 // pred_check
          %p210 = pneg %p120
        $region22: #{attention_forward.1} parent=11 // pred_check_branch
          %212 = sbr.rel (%p210) target = $region24
        $region23: #{attention_forward.1} parent=11 // pred_region
          %s214 = ssub.s32 256, 256
          %215 = vsyncadd [#allocation11], %s214
          %s216 = sshll.u32 [#allocation10], 4
          %s217 = int_to_ptr.vmem [resolvable:$true] %s216
          %222 = dma.hbm_to_vmem [thread:$0]  %s3, 256, %s217, [#allocation11], 64, 64, 4
        $region24: #{attention_forward.1} parent=11 // pred_fallthru
          _
        // Predicated region
        $region25: #{attention_forward.1} parent=11 // pred_check
          %p223 = pneg %p141
        $region26: #{attention_forward.1} parent=11 // pred_check_branch
          %225 = sbr.rel (%p223) target = $region28
        $region27: #{attention_forward.1} parent=11 // pred_region
          %s227 = ssub.s32 16, 16
          %228 = vsyncadd [#allocation11], %s227
          %s230 = sshll.u32 [#allocation12], 4
          %s231 = int_to_ptr.vmem [resolvable:$true] %s230
          %233 = dma.hbm_to_vmem [thread:$0]  %s4, 16, %s231, [#allocation11]
        $region28: #{attention_forward.1} parent=11 // pred_fallthru
          _
      $region12: #{attention_forward.1} parent=5 // pred_fallthru
        _
      %p234 = scmp.lt.s32.totalorder %s19, 2
      // Predicated region
      $region29: #{attention_forward.1} parent=5 // pred_check
        %p235 = pneg %p234
      $region30: #{attention_forward.1} parent=5 // pred_check_branch
        %237 = sbr.rel (%p235) target = $region32
      $region31: #{attention_forward.1} parent=5 // pred_region
        // Predicated region
        $region33: #{attention_forward.1} parent=31 // pred_check
          %p238 = pneg %p51
        $region34: #{attention_forward.1} parent=31 // pred_check_branch
          %240 = sbr.rel (%p238) target = $region36
        $region35: #{attention_forward.1} parent=31 // pred_region
          %s241 = sand.u32 %s41, 1
          %s242 = scalar_lea.sflag [#allocation5], %s241
          %s243 = sand.u32 %s41, 1
          %s244 = smul.addr %s243, 4
          %s245 = scalar_lea.vmem [#allocation4], %s244
          %s247 = ssub.s32 64, 64
          %248 = vsyncadd %s242, %s247
          %s249 = smul.addr %s26, 64
          %s250 = scalar_lea.hbm %s0, %s249
          %s252 = sshll.u32 %s245, 4
          %s253 = int_to_ptr.vmem [resolvable:$true] %s252
          %255 = dma.hbm_to_vmem [thread:$0]  %s250, 64, %s253, %s242
        $region36: #{attention_forward.1} parent=31 // pred_fallthru
          _
      $region32: #{attention_forward.1} parent=5 // pred_fallthru
        _
      %p256 = scmp.le.s32.totalorder 1, %s19
      %p257 = scmp.lt.s32.totalorder %s19, 3
      %p258 = pnand %p256, %p257
      %p259 = pneg %p258
      // Predicated region
      $region37: #{attention_forward.1} parent=5 // pred_check
        _
      $region38: #{attention_forward.1} parent=5 // pred_check_branch
        %261 = sbr.rel (%p258) target = $region40
      $region39: #{attention_forward.1} parent=5 // pred_region
        %s262 = ssub.s32 %s19, 1
        %s263 = sand.u32 %s44, 1
        %s264 = scalar_lea.sflag [#allocation5], %s263
        %s265 = sand.u32 %s44, 1
        %s266 = smul.addr %s265, 4
        %s267 = scalar_lea.vmem [#allocation4], %s266
        // Predicated region
        $region41: #{attention_forward.1} parent=39 // pred_check
          %p268 = pneg %p57
        $region42: #{attention_forward.1} parent=39 // pred_check_branch
          %270 = sbr.rel (%p268) target = $region44
        $region43: #{attention_forward.1} parent=39 // pred_region
          %271 = dma.done %s264, 64
        $region44: #{attention_forward.1} parent=39 // pred_fallthru
          _
        // Predicated region
        $region45: #{attention_forward.1} parent=39 // pred_check
          %p272 = pneg %p78
        $region46: #{attention_forward.1} parent=39 // pred_check_branch
          %274 = sbr.rel (%p272) target = $region48
        $region47: #{attention_forward.1} parent=39 // pred_region
          %275 = dma.done [#allocation8], 256
        $region48: #{attention_forward.1} parent=39 // pred_fallthru
          _
        // Predicated region
        $region49: #{attention_forward.1} parent=39 // pred_check
          %p276 = pneg %p99
        $region50: #{attention_forward.1} parent=39 // pred_check_branch
          %278 = sbr.rel (%p276) target = $region52
        $region51: #{attention_forward.1} parent=39 // pred_region
          %279 = dma.done [#allocation8], 256
        $region52: #{attention_forward.1} parent=39 // pred_fallthru
          _
        // Predicated region
        $region53: #{attention_forward.1} parent=39 // pred_check
          %p280 = pneg %p120
        $region54: #{attention_forward.1} parent=39 // pred_check_branch
          %282 = sbr.rel (%p280) target = $region56
        $region55: #{attention_forward.1} parent=39 // pred_region
          %283 = dma.done [#allocation11], 256
        $region56: #{attention_forward.1} parent=39 // pred_fallthru
          _
        // Predicated region
        $region57: #{attention_forward.1} parent=39 // pred_check
          %p284 = pneg %p141
        $region58: #{attention_forward.1} parent=39 // pred_check_branch
          %286 = sbr.rel (%p284) target = $region60
        $region59: #{attention_forward.1} parent=39 // pred_region
          %287 = dma.done [#allocation11], 16
        $region60: #{attention_forward.1} parent=39 // pred_fallthru
          _
        %s288 = sand.u32 %s44, 1
        %s289 = scalar_lea.sflag [#allocation5], %s288
        %s290 = sand.u32 %s44, 1
        %s291 = smul.addr %s290, 4
        %s292 = scalar_lea.vmem [#allocation4], %s291
        %p293 = pneg %p57
        %p294 = pneg %p54
        %p295 = pneg %p78
        %p296 = pneg %p75
        %p297 = pneg %p99
        %p298 = pneg %p96
        %p299 = pneg %p120
        %p300 = pneg %p117
        %p301 = pneg %p141
        %p302 = pneg %p138
        %p303 = pneg %p169
        %p304 = pneg %p166
        %s305 = sand.u32 %s156, 1
        %s306 = scalar_lea.sflag [#allocation6], %s305
        %s307 = sand.u32 %s156, 1
        %s308 = smul.addr %s307, 8
        %s309 = scalar_lea.vmem [#allocation13], %s308
        %p311 = scmp.eq.s32.totalorder %s29, 0
        // Predicated region
        $region61: #{attention_forward.1} parent=39 // pred_check
          %p312 = pneg %p311
        $region62: #{attention_forward.1} parent=39 // pred_check_branch
          %314 = sbr.rel (%p312) target = $region64
        $region63: #{attention_forward.1} parent=39 // pred_region
          %v315 = vld [vmem:[%s267] sm:$0xf]
          %v316 = vld [vmem:[#allocation9] sm:$0xf]
          %v317 = vld [vmem:[#allocation9 + $0x4] sm:$0xf]
          %v318 = vld [vmem:[#allocation9 + $0x8] sm:$0xf]
          %v319 = vld [vmem:[#allocation9 + $0xc] sm:$0xf]
          %v324 = vunpack.c.l.b16 %v316
          %v325 = vunpack.c.l.b16 %v317
          %v326 = vunpack.c.l.b16 %v318
          %v327 = vunpack.c.l.b16 %v319
          %v328 = vpack.c.b16 %v325, %v324
          %v329 = vpack.c.b16 %v327, %v326
          %vm332 = vcmask 261120
          %v334 = vsel %vm332, %v315, 0
          %336 = vmatprep.subr.bf16.mxu0 0
          %337 = vmatpush1.bf16.msra.mxu0 %v328
          %338 = vmatprep.subr.bf16.mxu0 0
          %339 = vmatpush1.bf16.msra.mxu0 %v329
          %340 = vmatprep.subr.bf16.mxu0 0
          %341 = vmatpush1.bf16.msra.mxu0 0
          %342 = vmatprep.subr.bf16.mxu0 0
          %343 = vmatpush1.bf16.msra.mxu0 0
          %344 = vmatprep.subr.bf16.mxu0 0
          %345 = vmatpush1.bf16.msra.mxu0 0
          %346 = vmatprep.subr.bf16.mxu0 0
          %347 = vmatpush1.bf16.msra.mxu0 0
          %348 = vmatprep.subr.bf16.mxu0 0
          %349 = vmatpush1.bf16.msra.mxu0 0
          %350 = vmatprep.subr.bf16.mxu0 0
          %351 = vmatpush1.bf16.msra.mxu0 0
          %352 = vmatprep.subr.bf16.mxu0 0
          %353 = vmatpush1.bf16.msra.mxu0 0
          %354 = vmatprep.subr.bf16.mxu0 0
          %355 = vmatpush1.bf16.msra.mxu0 0
          %356 = vmatprep.subr.bf16.mxu0 0
          %357 = vmatpush1.bf16.msra.mxu0 0
          %358 = vmatprep.subr.bf16.mxu0 0
          %359 = vmatpush1.bf16.msra.mxu0 0
          %360 = vmatprep.subr.bf16.mxu0 0
          %361 = vmatpush1.bf16.msra.mxu0 0
          %362 = vmatprep.subr.bf16.mxu0 0
          %363 = vmatpush1.bf16.msra.mxu0 0
          %364 = vmatprep.subr.bf16.mxu0 0
          %365 = vmatpush1.bf16.msra.mxu0 0
          %366 = vmatprep.subr.bf16.mxu0 0
          %367 = vmatpush1.bf16.msra.mxu0 0
          %368 = vmatprep.mubr.bf16.mxu0 0
          %369 = vmatmul.mubr.bf16.gmra.mrb[0].mxu0 %v334
          %v370 = vpop.f32.mrb[0].mxu0
          %v371 = vadd.f32 0.0, %v370
          %v372 = vpop.f32.mrb[0].mxu0
          %v373 = vpop.f32.mrb[0].mxu0
          %v374 = vpop.f32.mrb[0].mxu0
          %375 = vdwg.mxu0
          %v376 = vpack.c.bf16 %v371, %v371
          %vm377 = vcmask 519168
          %378 = vst.msk [vmem:[#allocation2] sm:$0xf] %vm377, %v376
        $region64: #{attention_forward.1} parent=39 // pred_fallthru
          _
        %s379 = smul.u32 %s29, 8
        %s380 = sshra.s32 %s379, 3
        %s381 = sand.u32 %s379, 7
        %s382 = smul.addr %s380, 4
        %s383 = scalar_lea.vmem %s267, %s382 [#allocation4]
        %v384 = vld [vmem:[%s383] sm:$0xf]
        %v385 = vld [vmem:[#allocation7] sm:$0xf]
        %v386 = vld [vmem:[#allocation7 + $0x4] sm:$0xf]
        %v387 = vld [vmem:[#allocation7 + $0x8] sm:$0xf]
        %v388 = vld [vmem:[#allocation7 + $0xc] sm:$0xf]
        %v393 = vunpack.c.l.b16 %v385
        %v394 = vunpack.c.l.b16 %v386
        %v395 = vunpack.c.l.b16 %v387
        %v396 = vunpack.c.l.b16 %v388
        %v397 = vpack.c.b16 %v394, %v393
        %v398 = vpack.c.b16 %v396, %v395
        %vm401 = vcmask 261120
        %v403 = vsel %vm401, %v384, 0
        %405 = vmatprep.subr.bf16.mxu0 0
        %406 = vmatpush1.bf16.msra.mxu0 %v397
        %407 = vmatprep.subr.bf16.mxu0 0
        %408 = vmatpush1.bf16.msra.mxu0 %v398
        %409 = vmatprep.subr.bf16.mxu0 0
        %410 = vmatpush1.bf16.msra.mxu0 0
        %411 = vmatprep.subr.bf16.mxu0 0
        %412 = vmatpush1.bf16.msra.mxu0 0
        %413 = vmatprep.subr.bf16.mxu0 0
        %414 = vmatpush1.bf16.msra.mxu0 0
        %415 = vmatprep.subr.bf16.mxu0 0
        %416 = vmatpush1.bf16.msra.mxu0 0
        %417 = vmatprep.subr.bf16.mxu0 0
        %418 = vmatpush1.bf16.msra.mxu0 0
        %419 = vmatprep.subr.bf16.mxu0 0
        %420 = vmatpush1.bf16.msra.mxu0 0
        %421 = vmatprep.subr.bf16.mxu0 0
        %422 = vmatpush1.bf16.msra.mxu0 0
        %423 = vmatprep.subr.bf16.mxu0 0
        %424 = vmatpush1.bf16.msra.mxu0 0
        %425 = vmatprep.subr.bf16.mxu0 0
        %426 = vmatpush1.bf16.msra.mxu0 0
        %427 = vmatprep.subr.bf16.mxu0 0
        %428 = vmatpush1.bf16.msra.mxu0 0
        %429 = vmatprep.subr.bf16.mxu0 0
        %430 = vmatpush1.bf16.msra.mxu0 0
        %431 = vmatprep.subr.bf16.mxu0 0
        %432 = vmatpush1.bf16.msra.mxu0 0
        %433 = vmatprep.subr.bf16.mxu0 0
        %434 = vmatpush1.bf16.msra.mxu0 0
        %435 = vmatprep.subr.bf16.mxu0 0
        %436 = vmatpush1.bf16.msra.mxu0 0
        %437 = vmatprep.mubr.bf16.mxu0 0
        %438 = vmatmul.mubr.bf16.gmra.mrb[0].mxu0 %v403
        %v439 = vpop.f32.mrb[0].mxu0
        %v440 = vadd.f32 0.0, %v439
        %v441 = vpop.f32.mrb[0].mxu0
        %v442 = vpop.f32.mrb[0].mxu0
        %v443 = vpop.f32.mrb[0].mxu0
        %444 = vdwg.mxu0
        %v445 = vpack.c.bf16 %v440, %v440
        %v446 = vld [vmem:[#allocation2] sm:$0xf]
        %vm447 = vcmask 64512
        %v449 = vsel %vm447, %v445, 0
        %v452 = vsel %vm447, %v446, 0
        %454 = vmatprep.subr.bf16.mxu0 0
        %455 = vmatpush1.bf16.xpose.msra.mxu0 %v452
        %456 = vmatprep.subr.bf16.mxu0 0
        %457 = vmatpush1.bf16.xpose.msra.mxu0 0
        %458 = vmatprep.subr.bf16.mxu0 0
        %459 = vmatpush1.bf16.xpose.msra.mxu0 0
        %460 = vmatprep.subr.bf16.mxu0 0
        %461 = vmatpush1.bf16.xpose.msra.mxu0 0
        %462 = vmatprep.subr.bf16.mxu0 0
        %463 = vmatpush1.bf16.xpose.msra.mxu0 0
        %464 = vmatprep.subr.bf16.mxu0 0
        %465 = vmatpush1.bf16.xpose.msra.mxu0 0
        %466 = vmatprep.subr.bf16.mxu0 0
        %467 = vmatpush1.bf16.xpose.msra.mxu0 0
        %468 = vmatprep.subr.bf16.mxu0 0
        %469 = vmatpush1.bf16.xpose.msra.mxu0 0
        %470 = vmatprep.subr.bf16.mxu0 0
        %471 = vmatpush1.bf16.xpose.msra.mxu0 0
        %472 = vmatprep.subr.bf16.mxu0 0
        %473 = vmatpush1.bf16.xpose.msra.mxu0 0
        %474 = vmatprep.subr.bf16.mxu0 0
        %475 = vmatpush1.bf16.xpose.msra.mxu0 0
        %476 = vmatprep.subr.bf16.mxu0 0
        %477 = vmatpush1.bf16.xpose.msra.mxu0 0
        %478 = vmatprep.subr.bf16.mxu0 0
        %479 = vmatpush1.bf16.xpose.msra.mxu0 0
        %480 = vmatprep.subr.bf16.mxu0 0
        %481 = vmatpush1.bf16.xpose.msra.mxu0 0
        %482 = vmatprep.subr.bf16.mxu0 0
        %483 = vmatpush1.bf16.xpose.msra.mxu0 0
        %484 = vmatprep.subr.bf16.mxu0 0
        %485 = vmatpush1.bf16.xpose.msra.mxu0 0
        %486 = vmatprep.mubr.bf16.mxu0 0
        %487 = vmatmul.mubr.bf16.gmra.mrb[0].mxu0 %v449
        %v488 = vpop.f32.mrb[0].mxu0
        %v489 = vadd.f32 0.0, %v488
        %v490 = vpop.f32.mrb[0].mxu0
        %v491 = vpop.f32.mrb[0].mxu0
        %v492 = vpop.f32.mrb[0].mxu0
        %493 = vdwg.mxu0
        %v494 = vsel %vm447, %v489, -inf
        %495 = vmax.xlane.f32.xlu0 %v494
        %v496 = vpop.xlane.xlu0 %495
        %v497 = vsub.f32 %v489, %v496
        %v498 = vmul.f32 %v497, 1.442695
        %v499 = vpow.pop %v498
        %v500 = vsel %vm447, %v499, 0.0
        %501 = vadd.xlane.f32.xlu0 %v500
        %v502 = vpop.xlane.xlu0 %501
        %v503 = vpack.c.bf16 %v499, %v499
        %v505 = vunpack.c.l.b16 %v446
        %v506 = vpack.c.b16 %v505, %v505
        %507 = vrot.lane.b32.xlu0 %v506, 96
        %v508 = vpop.permute.xlu0 %507
        %v510 = vsel %vm447, %v503, 0
        %vm512 = vcmask 1043456
        %v514 = vsel %vm512, %v508, 0
        %516 = vmatprep.subr.bf16.mxu0 0
        %517 = vmatpush1.bf16.msra.mxu0 %v514
        %518 = vmatprep.subr.bf16.mxu0 0
        %519 = vmatpush1.bf16.msra.mxu0 0
        %520 = vmatprep.subr.bf16.mxu0 0
        %521 = vmatpush1.bf16.msra.mxu0 0
        %522 = vmatprep.subr.bf16.mxu0 0
        %523 = vmatpush1.bf16.msra.mxu0 0
        %524 = vmatprep.subr.bf16.mxu0 0
        %525 = vmatpush1.bf16.msra.mxu0 0
        %526 = vmatprep.subr.bf16.mxu0 0
        %527 = vmatpush1.bf16.msra.mxu0 0
        %528 = vmatprep.subr.bf16.mxu0 0
        %529 = vmatpush1.bf16.msra.mxu0 0
        %530 = vmatprep.subr.bf16.mxu0 0
        %531 = vmatpush1.bf16.msra.mxu0 0
        %532 = vmatprep.subr.bf16.mxu0 0
        %533 = vmatpush1.bf16.msra.mxu0 0
        %534 = vmatprep.subr.bf16.mxu0 0
        %535 = vmatpush1.bf16.msra.mxu0 0
        %536 = vmatprep.subr.bf16.mxu0 0
        %537 = vmatpush1.bf16.msra.mxu0 0
        %538 = vmatprep.subr.bf16.mxu0 0
        %539 = vmatpush1.bf16.msra.mxu0 0
        %540 = vmatprep.subr.bf16.mxu0 0
        %541 = vmatpush1.bf16.msra.mxu0 0
        %542 = vmatprep.subr.bf16.mxu0 0
        %543 = vmatpush1.bf16.msra.mxu0 0
        %544 = vmatprep.subr.bf16.mxu0 0
        %545 = vmatpush1.bf16.msra.mxu0 0
        %546 = vmatprep.subr.bf16.mxu0 0
        %547 = vmatpush1.bf16.msra.mxu0 0
        %548 = vmatprep.mubr.bf16.mxu0 0
        %549 = vmatmul.mubr.bf16.gmra.mrb[0].mxu0 %v510
        %v550 = vpop.f32.mrb[0].mxu0
        %v551 = vadd.f32 0.0, %v550
        %v552 = vpop.f32.mrb[0].mxu0
        %v553 = vpop.f32.mrb[0].mxu0
        %v554 = vpop.f32.mrb[0].mxu0
        %555 = vdwg.mxu0
        %v556 = vrcp.pop %v502
        %v557 = vmul.f32 %v551, %v556
        %v558 = vpack.c.bf16 %v557, %v557
        %vm559 = vcmask 60416
        %560 = vst.msk [vmem:[#allocation3] sm:$0xf] %vm559, %v558
        %v561 = vld [vmem:[#allocation2] sm:$0xf]
        %563 = vrot.lane.b32.xlu0 %v445, 120
        %v564 = vpop.permute.xlu0 %563
        %v566 = vunpack.c.l.b16 %v561
        %v567 = vpack.c.b16 %v566, %v566
        %568 = vrot.lane.b32.xlu0 %v567, 120
        %v569 = vpop.permute.xlu0 %568
        %v571 = vsel %vm447, %v564, 0
        %v574 = vsel %vm447, %v569, 0
        %576 = vmatprep.subr.bf16.mxu0 0
        %577 = vmatpush1.bf16.xpose.msra.mxu0 %v574
        %578 = vmatprep.subr.bf16.mxu0 0
        %579 = vmatpush1.bf16.xpose.msra.mxu0 0
        %580 = vmatprep.subr.bf16.mxu0 0
        %581 = vmatpush1.bf16.xpose.msra.mxu0 0
        %582 = vmatprep.subr.bf16.mxu0 0
        %583 = vmatpush1.bf16.xpose.msra.mxu0 0
        %584 = vmatprep.subr.bf16.mxu0 0
        %585 = vmatpush1.bf16.xpose.msra.mxu0 0
        %586 = vmatprep.subr.bf16.mxu0 0
        %587 = vmatpush1.bf16.xpose.msra.mxu0 0
        %588 = vmatprep.subr.bf16.mxu0 0
        %589 = vmatpush1.bf16.xpose.msra.mxu0 0
        %590 = vmatprep.subr.bf16.mxu0 0
        %591 = vmatpush1.bf16.xpose.msra.mxu0 0
        %592 = vmatprep.subr.bf16.mxu0 0
        %593 = vmatpush1.bf16.xpose.msra.mxu0 0
        %594 = vmatprep.subr.bf16.mxu0 0
        %595 = vmatpush1.bf16.xpose.msra.mxu0 0
        %596 = vmatprep.subr.bf16.mxu0 0
        %597 = vmatpush1.bf16.xpose.msra.mxu0 0
        %598 = vmatprep.subr.bf16.mxu0 0
        %599 = vmatpush1.bf16.xpose.msra.mxu0 0
        %600 = vmatprep.subr.bf16.mxu0 0
        %601 = vmatpush1.bf16.xpose.msra.mxu0 0
        %602 = vmatprep.subr.bf16.mxu0 0
        %603 = vmatpush1.bf16.xpose.msra.mxu0 0
        %604 = vmatprep.subr.bf16.mxu0 0
        %605 = vmatpush1.bf16.xpose.msra.mxu0 0
        %606 = vmatprep.subr.bf16.mxu0 0
        %607 = vmatpush1.bf16.xpose.msra.mxu0 0
        %608 = vmatprep.mubr.bf16.mxu0 0
        %609 = vmatmul.mubr.bf16.gmra.mrb[0].mxu0 %v571
        %v610 = vpop.f32.mrb[0].mxu0
        %v611 = vadd.f32 0.0, %v610
        %v612 = vpop.f32.mrb[0].mxu0
        %v613 = vpop.f32.mrb[0].mxu0
        %v614 = vpop.f32.mrb[0].mxu0
        %615 = vdwg.mxu0
        %v616 = vsel %vm447, %v611, -inf
        %617 = vmax.xlane.f32.xlu0 %v616
        %v618 = vpop.xlane.xlu0 %617
        %v619 = vsub.f32 %v611, %v618
        %v620 = vmul.f32 %v619, 1.442695
        %v621 = vpow.pop %v620
        %v622 = vsel %vm447, %v621, 0.0
        %623 = vadd.xlane.f32.xlu0 %v622
        %v624 = vpop.xlane.xlu0 %623
        %v625 = vpack.c.bf16 %v621, %v621
        %626 = vrot.lane.b32.xlu0 %v567, 88
        %v627 = vpop.permute.xlu0 %626
        %v629 = vsel %vm447, %v625, 0
        %v632 = vsel %vm512, %v627, 0
        %634 = vmatprep.subr.bf16.mxu0 0
        %635 = vmatpush1.bf16.msra.mxu0 %v632
        %636 = vmatprep.subr.bf16.mxu0 0
        %637 = vmatpush1.bf16.msra.mxu0 0
        %638 = vmatprep.subr.bf16.mxu0 0
        %639 = vmatpush1.bf16.msra.mxu0 0
        %640 = vmatprep.subr.bf16.mxu0 0
        %641 = vmatpush1.bf16.msra.mxu0 0
        %642 = vmatprep.subr.bf16.mxu0 0
        %643 = vmatpush1.bf16.msra.mxu0 0
        %644 = vmatprep.subr.bf16.mxu0 0
        %645 = vmatpush1.bf16.msra.mxu0 0
        %646 = vmatprep.subr.bf16.mxu0 0
        %647 = vmatpush1.bf16.msra.mxu0 0
        %648 = vmatprep.subr.bf16.mxu0 0
        %649 = vmatpush1.bf16.msra.mxu0 0
        %650 = vmatprep.subr.bf16.mxu0 0
        %651 = vmatpush1.bf16.msra.mxu0 0
        %652 = vmatprep.subr.bf16.mxu0 0
        %653 = vmatpush1.bf16.msra.mxu0 0
        %654 = vmatprep.subr.bf16.mxu0 0
        %655 = vmatpush1.bf16.msra.mxu0 0
        %656 = vmatprep.subr.bf16.mxu0 0
        %657 = vmatpush1.bf16.msra.mxu0 0
        %658 = vmatprep.subr.bf16.mxu0 0
        %659 = vmatpush1.bf16.msra.mxu0 0
        %660 = vmatprep.subr.bf16.mxu0 0
        %661 = vmatpush1.bf16.msra.mxu0 0
        %662 = vmatprep.subr.bf16.mxu0 0
        %663 = vmatpush1.bf16.msra.mxu0 0
        %664 = vmatprep.subr.bf16.mxu0 0
        %665 = vmatpush1.bf16.msra.mxu0 0
        %666 = vmatprep.mubr.bf16.mxu0 0
        %667 = vmatmul.mubr.bf16.gmra.mrb[0].mxu0 %v629
        %v668 = vpop.f32.mrb[0].mxu0
        %v669 = vadd.f32 0.0, %v668
        %v670 = vpop.f32.mrb[0].mxu0
        %v671 = vpop.f32.mrb[0].mxu0
        %v672 = vpop.f32.mrb[0].mxu0
        %673 = vdwg.mxu0
        %v674 = vrcp.pop %v624
        %v675 = vmul.f32 %v669, %v674
        %v676 = vpack.c.bf16 %v675, %v675
        %v678 = vunpack.c.l.b16 %v676
        %v679 = vpack.c.b16 %v678, %v678
        %680 = vrot.lane.b32.xlu0 %v679, 8
        %v681 = vpop.permute.xlu0 %680
        %vm683 = vcmask 126016
        %684 = vst.msk [vmem:[#allocation3] sm:$0xf] %vm683, %v681
        %v685 = vld [vmem:[#allocation2] sm:$0xf]
        %686 = vrot.lane.b32.xlu0 %v445, 112
        %v687 = vpop.permute.xlu0 %686
        %v689 = vunpack.c.l.b16 %v685
        %v690 = vpack.c.b16 %v689, %v689
        %691 = vrot.lane.b32.xlu0 %v690, 112
        %v692 = vpop.permute.xlu0 %691
        %v694 = vsel %vm447, %v687, 0
        %v697 = vsel %vm447, %v692, 0
        %699 = vmatprep.subr.bf16.mxu0 0
        %700 = vmatpush1.bf16.xpose.msra.mxu0 %v697
        %701 = vmatprep.subr.bf16.mxu0 0
        %702 = vmatpush1.bf16.xpose.msra.mxu0 0
        %703 = vmatprep.subr.bf16.mxu0 0
        %704 = vmatpush1.bf16.xpose.msra.mxu0 0
        %705 = vmatprep.subr.bf16.mxu0 0
        %706 = vmatpush1.bf16.xpose.msra.mxu0 0
        %707 = vmatprep.subr.bf16.mxu0 0
        %708 = vmatpush1.bf16.xpose.msra.mxu0 0
        %709 = vmatprep.subr.bf16.mxu0 0
        %710 = vmatpush1.bf16.xpose.msra.mxu0 0
        %711 = vmatprep.subr.bf16.mxu0 0
        %712 = vmatpush1.bf16.xpose.msra.mxu0 0
        %713 = vmatprep.subr.bf16.mxu0 0
        %714 = vmatpush1.bf16.xpose.msra.mxu0 0
        %715 = vmatprep.subr.bf16.mxu0 0
        %716 = vmatpush1.bf16.xpose.msra.mxu0 0
        %717 = vmatprep.subr.bf16.mxu0 0
        %718 = vmatpush1.bf16.xpose.msra.mxu0 0
        %719 = vmatprep.subr.bf16.mxu0 0
        %720 = vmatpush1.bf16.xpose.msra.mxu0 0
        %721 = vmatprep.subr.bf16.mxu0 0
        %722 = vmatpush1.bf16.xpose.msra.mxu0 0
        %723 = vmatprep.subr.bf16.mxu0 0
        %724 = vmatpush1.bf16.xpose.msra.mxu0 0
        %725 = vmatprep.subr.bf16.mxu0 0
        %726 = vmatpush1.bf16.xpose.msra.mxu0 0
        %727 = vmatprep.subr.bf16.mxu0 0
        %728 = vmatpush1.bf16.xpose.msra.mxu0 0
        %729 = vmatprep.subr.bf16.mxu0 0
        %730 = vmatpush1.bf16.xpose.msra.mxu0 0
        %731 = vmatprep.mubr.bf16.mxu0 0
        %732 = vmatmul.mubr.bf16.gmra.mrb[0].mxu0 %v694
        %v733 = vpop.f32.mrb[0].mxu0
        %v734 = vadd.f32 0.0, %v733
        %v735 = vpop.f32.mrb[0].mxu0
        %v736 = vpop.f32.mrb[0].mxu0
        %v737 = vpop.f32.mrb[0].mxu0
        %738 = vdwg.mxu0
        %v739 = vsel %vm447, %v734, -inf
        %740 = vmax.xlane.f32.xlu0 %v739
        %v741 = vpop.xlane.xlu0 %740
        %v742 = vsub.f32 %v734, %v741
        %v743 = vmul.f32 %v742, 1.442695
        %v744 = vpow.pop %v743
        %v745 = vsel %vm447, %v744, 0.0
        %746 = vadd.xlane.f32.xlu0 %v745
        %v747 = vpop.xlane.xlu0 %746
        %v748 = vpack.c.bf16 %v744, %v744
        %749 = vrot.lane.b32.xlu0 %v690, 80
        %v750 = vpop.permute.xlu0 %749
        %v752 = vsel %vm447, %v748, 0
        %v755 = vsel %vm512, %v750, 0
        %757 = vmatprep.subr.bf16.mxu0 0
        %758 = vmatpush1.bf16.msra.mxu0 %v755
        %759 = vmatprep.subr.bf16.mxu0 0
        %760 = vmatpush1.bf16.msra.mxu0 0
        %761 = vmatprep.subr.bf16.mxu0 0
        %762 = vmatpush1.bf16.msra.mxu0 0
        %763 = vmatprep.subr.bf16.mxu0 0
        %764 = vmatpush1.bf16.msra.mxu0 0
        %765 = vmatprep.subr.bf16.mxu0 0
        %766 = vmatpush1.bf16.msra.mxu0 0
        %767 = vmatprep.subr.bf16.mxu0 0
        %768 = vmatpush1.bf16.msra.mxu0 0
        %769 = vmatprep.subr.bf16.mxu0 0
        %770 = vmatpush1.bf16.msra.mxu0 0
        %771 = vmatprep.subr.bf16.mxu0 0
        %772 = vmatpush1.bf16.msra.mxu0 0
        %773 = vmatprep.subr.bf16.mxu0 0
        %774 = vmatpush1.bf16.msra.mxu0 0
        %775 = vmatprep.subr.bf16.mxu0 0
        %776 = vmatpush1.bf16.msra.mxu0 0
        %777 = vmatprep.subr.bf16.mxu0 0
        %778 = vmatpush1.bf16.msra.mxu0 0
        %779 = vmatprep.subr.bf16.mxu0 0
        %780 = vmatpush1.bf16.msra.mxu0 0
        %781 = vmatprep.subr.bf16.mxu0 0
        %782 = vmatpush1.bf16.msra.mxu0 0
        %783 = vmatprep.subr.bf16.mxu0 0
        %784 = vmatpush1.bf16.msra.mxu0 0
        %785 = vmatprep.subr.bf16.mxu0 0
        %786 = vmatpush1.bf16.msra.mxu0 0
        %787 = vmatprep.subr.bf16.mxu0 0
        %788 = vmatpush1.bf16.msra.mxu0 0
        %789 = vmatprep.mubr.bf16.mxu0 0
        %790 = vmatmul.mubr.bf16.gmra.mrb[0].mxu0 %v752
        %v791 = vpop.f32.mrb[0].mxu0
        %v792 = vadd.f32 0.0, %v791
        %v793 = vpop.f32.mrb[0].mxu0
        %v794 = vpop.f32.mrb[0].mxu0
        %v795 = vpop.f32.mrb[0].mxu0
        %796 = vdwg.mxu0
        %v797 = vrcp.pop %v747
        %v798 = vmul.f32 %v792, %v797
        %v799 = vpack.c.bf16 %v798, %v798
        %v801 = vunpack.c.l.b16 %v799
        %v802 = vpack.c.b16 %v801, %v801
        %803 = vrot.lane.b32.xlu0 %v802, 16
        %v804 = vpop.permute.xlu0 %803
        %vm806 = vcmask 191616
        %807 = vst.msk [vmem:[#allocation3] sm:$0xf] %vm806, %v804
        %v808 = vld [vmem:[#allocation2] sm:$0xf]
        %809 = vrot.lane.b32.xlu0 %v445, 104
        %v810 = vpop.permute.xlu0 %809
        %v812 = vunpack.c.l.b16 %v808
        %v813 = vpack.c.b16 %v812, %v812
        %814 = vrot.lane.b32.xlu0 %v813, 104
        %v815 = vpop.permute.xlu0 %814
        %v817 = vsel %vm447, %v810, 0
        %v820 = vsel %vm447, %v815, 0
        %822 = vmatprep.subr.bf16.mxu0 0
        %823 = vmatpush1.bf16.xpose.msra.mxu0 %v820
        %824 = vmatprep.subr.bf16.mxu0 0
        %825 = vmatpush1.bf16.xpose.msra.mxu0 0
        %826 = vmatprep.subr.bf16.mxu0 0
        %827 = vmatpush1.bf16.xpose.msra.mxu0 0
        %828 = vmatprep.subr.bf16.mxu0 0
        %829 = vmatpush1.bf16.xpose.msra.mxu0 0
        %830 = vmatprep.subr.bf16.mxu0 0
        %831 = vmatpush1.bf16.xpose.msra.mxu0 0
        %832 = vmatprep.subr.bf16.mxu0 0
        %833 = vmatpush1.bf16.xpose.msra.mxu0 0
        %834 = vmatprep.subr.bf16.mxu0 0
        %835 = vmatpush1.bf16.xpose.msra.mxu0 0
        %836 = vmatprep.subr.bf16.mxu0 0
        %837 = vmatpush1.bf16.xpose.msra.mxu0 0
        %838 = vmatprep.subr.bf16.mxu0 0
        %839 = vmatpush1.bf16.xpose.msra.mxu0 0
        %840 = vmatprep.subr.bf16.mxu0 0
        %841 = vmatpush1.bf16.xpose.msra.mxu0 0
        %842 = vmatprep.subr.bf16.mxu0 0
        %843 = vmatpush1.bf16.xpose.msra.mxu0 0
        %844 = vmatprep.subr.bf16.mxu0 0
        %845 = vmatpush1.bf16.xpose.msra.mxu0 0
        %846 = vmatprep.subr.bf16.mxu0 0
        %847 = vmatpush1.bf16.xpose.msra.mxu0 0
        %848 = vmatprep.subr.bf16.mxu0 0
        %849 = vmatpush1.bf16.xpose.msra.mxu0 0
        %850 = vmatprep.subr.bf16.mxu0 0
        %851 = vmatpush1.bf16.xpose.msra.mxu0 0
        %852 = vmatprep.subr.bf16.mxu0 0
        %853 = vmatpush1.bf16.xpose.msra.mxu0 0
        %854 = vmatprep.mubr.bf16.mxu0 0
        %855 = vmatmul.mubr.bf16.gmra.mrb[0].mxu0 %v817
        %v856 = vpop.f32.mrb[0].mxu0
        %v857 = vadd.f32 0.0, %v856
        %v858 = vpop.f32.mrb[0].mxu0
        %v859 = vpop.f32.mrb[0].mxu0
        %v860 = vpop.f32.mrb[0].mxu0
        %861 = vdwg.mxu0
        %v862 = vsel %vm447, %v857, -inf
        %863 = vmax.xlane.f32.xlu0 %v862
        %v864 = vpop.xlane.xlu0 %863
        %v865 = vsub.f32 %v857, %v864
        %v866 = vmul.f32 %v865, 1.442695
        %v867 = vpow.pop %v866
        %v868 = vsel %vm447, %v867, 0.0
        %869 = vadd.xlane.f32.xlu0 %v868
        %v870 = vpop.xlane.xlu0 %869
        %v871 = vpack.c.bf16 %v867, %v867
        %872 = vrot.lane.b32.xlu0 %v813, 72
        %v873 = vpop.permute.xlu0 %872
        %v875 = vsel %vm447, %v871, 0
        %v878 = vsel %vm512, %v873, 0
        %880 = vmatprep.subr.bf16.mxu0 0
        %881 = vmatpush1.bf16.msra.mxu0 %v878
        %882 = vmatprep.subr.bf16.mxu0 0
        %883 = vmatpush1.bf16.msra.mxu0 0
        %884 = vmatprep.subr.bf16.mxu0 0
        %885 = vmatpush1.bf16.msra.mxu0 0
        %886 = vmatprep.subr.bf16.mxu0 0
        %887 = vmatpush1.bf16.msra.mxu0 0
        %888 = vmatprep.subr.bf16.mxu0 0
        %889 = vmatpush1.bf16.msra.mxu0 0
        %890 = vmatprep.subr.bf16.mxu0 0
        %891 = vmatpush1.bf16.msra.mxu0 0
        %892 = vmatprep.subr.bf16.mxu0 0
        %893 = vmatpush1.bf16.msra.mxu0 0
        %894 = vmatprep.subr.bf16.mxu0 0
        %895 = vmatpush1.bf16.msra.mxu0 0
        %896 = vmatprep.subr.bf16.mxu0 0
        %897 = vmatpush1.bf16.msra.mxu0 0
        %898 = vmatprep.subr.bf16.mxu0 0
        %899 = vmatpush1.bf16.msra.mxu0 0
        %900 = vmatprep.subr.bf16.mxu0 0
        %901 = vmatpush1.bf16.msra.mxu0 0
        %902 = vmatprep.subr.bf16.mxu0 0
        %903 = vmatpush1.bf16.msra.mxu0 0
        %904 = vmatprep.subr.bf16.mxu0 0
        %905 = vmatpush1.bf16.msra.mxu0 0
        %906 = vmatprep.subr.bf16.mxu0 0
        %907 = vmatpush1.bf16.msra.mxu0 0
        %908 = vmatprep.subr.bf16.mxu0 0
        %909 = vmatpush1.bf16.msra.mxu0 0
        %910 = vmatprep.subr.bf16.mxu0 0
        %911 = vmatpush1.bf16.msra.mxu0 0
        %912 = vmatprep.mubr.bf16.mxu0 0
        %913 = vmatmul.mubr.bf16.gmra.mrb[0].mxu0 %v875
        %v914 = vpop.f32.mrb[0].mxu0
        %v915 = vadd.f32 0.0, %v914
        %v916 = vpop.f32.mrb[0].mxu0
        %v917 = vpop.f32.mrb[0].mxu0
        %v918 = vpop.f32.mrb[0].mxu0
        %919 = vdwg.mxu0
        %v920 = vrcp.pop %v870
        %v921 = vmul.f32 %v915, %v920
        %v922 = vpack.c.bf16 %v921, %v921
        %v924 = vunpack.c.l.b16 %v922
        %v925 = vpack.c.b16 %v924, %v924
        %926 = vrot.lane.b32.xlu0 %v925, 24
        %v927 = vpop.permute.xlu0 %926
        %vm929 = vcmask 257216
        %930 = vst.msk [vmem:[#allocation3] sm:$0xf] %vm929, %v927
        %v931 = vld [vmem:[#allocation3] sm:$0xf]
        %v932 = vld [vmem:[#allocation10] sm:$0xf]
        %v933 = vld [vmem:[#allocation10 + $0x4] sm:$0xf]
        %v934 = vld [vmem:[#allocation10 + $0x8] sm:$0xf]
        %v935 = vld [vmem:[#allocation10 + $0xc] sm:$0xf]
        %v936 = vld [vmem:[#allocation12] sm:$0x1]
        %v938 = vlaneseq
        %v939 = vshrl.u32 %v938, 7
        %v940 = vsub.s32 0, %v939
        %v941 = vrot.slane %v936, %v940
        %v947 = vunpack.c.l.b16 %v932
        %v948 = vunpack.c.l.b16 %v933
        %v949 = vunpack.c.l.b16 %v934
        %v950 = vunpack.c.l.b16 %v935
        %v951 = vpack.c.b16 %v948, %v947
        %v952 = vpack.c.b16 %v950, %v949
        %v956 = vsel %vm401, %v931, 0
        %958 = vmatprep.subr.bf16.mxu0 0
        %959 = vmatpush1.bf16.msra.mxu0 %v951
        %960 = vmatprep.subr.bf16.mxu0 0
        %961 = vmatpush1.bf16.msra.mxu0 %v952
        %962 = vmatprep.subr.bf16.mxu0 0
        %963 = vmatpush1.bf16.msra.mxu0 0
        %964 = vmatprep.subr.bf16.mxu0 0
        %965 = vmatpush1.bf16.msra.mxu0 0
        %966 = vmatprep.subr.bf16.mxu0 0
        %967 = vmatpush1.bf16.msra.mxu0 0
        %968 = vmatprep.subr.bf16.mxu0 0
        %969 = vmatpush1.bf16.msra.mxu0 0
        %970 = vmatprep.subr.bf16.mxu0 0
        %971 = vmatpush1.bf16.msra.mxu0 0
        %972 = vmatprep.subr.bf16.mxu0 0
        %973 = vmatpush1.bf16.msra.mxu0 0
        %974 = vmatprep.subr.bf16.mxu0 0
        %975 = vmatpush1.bf16.msra.mxu0 0
        %976 = vmatprep.subr.bf16.mxu0 0
        %977 = vmatpush1.bf16.msra.mxu0 0
        %978 = vmatprep.subr.bf16.mxu0 0
        %979 = vmatpush1.bf16.msra.mxu0 0
        %980 = vmatprep.subr.bf16.mxu0 0
        %981 = vmatpush1.bf16.msra.mxu0 0
        %982 = vmatprep.subr.bf16.mxu0 0
        %983 = vmatpush1.bf16.msra.mxu0 0
        %984 = vmatprep.subr.bf16.mxu0 0
        %985 = vmatpush1.bf16.msra.mxu0 0
        %986 = vmatprep.subr.bf16.mxu0 0
        %987 = vmatpush1.bf16.msra.mxu0 0
        %988 = vmatprep.subr.bf16.mxu0 0
        %989 = vmatpush1.bf16.msra.mxu0 0
        %990 = vmatprep.mubr.bf16.mxu0 0
        %991 = vmatmul.mubr.bf16.gmra.mrb[0].mxu0 %v956
        %v992 = vpop.f32.mrb[0].mxu0
        %v993 = vadd.f32 %v941, %v992
        %v994 = vpop.f32.mrb[0].mxu0
        %v995 = vpop.f32.mrb[0].mxu0
        %v996 = vpop.f32.mrb[0].mxu0
        %997 = vdwg.mxu0
        %998 = vst.msk [vmem:[%s309] sm:$0xff] %vm401, %v993
        %s999 = sand.u32 %s156, 1
        %s1000 = scalar_lea.sflag [#allocation6], %s999
        %s1001 = sand.u32 %s156, 1
        %s1002 = smul.addr %s1001, 8
        %s1003 = scalar_lea.vmem [#allocation13], %s1002
        // Predicated region
        $region65: #{attention_forward.1} parent=39 // pred_check
          %p1004 = pneg %p166
        $region66: #{attention_forward.1} parent=39 // pred_check_branch
          %1006 = sbr.rel (%p1004) target = $region68
        $region67: #{attention_forward.1} parent=39 // pred_region
          %s1008 = ssub.s32 128, 128
          %1009 = vsyncadd %s1000, %s1008
          %s1010 = sadd.s32 %s29, %s28
          %s1011 = smul.addr %s1010, 128
          %s1012 = scalar_lea.hbm %s5, %s1011
          %s1014 = sshll.u32 %s1003, 4
          %s1015 = int_to_ptr.vmem [resolvable:$true] %s1014
          %1017 = dma.vmem_to_hbm [thread:$0]  %s1015, 128, %s1012, %s1000
        $region68: #{attention_forward.1} parent=39 // pred_fallthru
          _
      $region40: #{attention_forward.1} parent=5 // pred_fallthru
        _
      %p1018 = scmp.le.s32.totalorder 2, %s19
      // Predicated region
      $region69: #{attention_forward.1} parent=5 // pred_check
        %p1019 = pneg %p1018
      $region70: #{attention_forward.1} parent=5 // pred_check_branch
        %1021 = sbr.rel (%p1019) target = $region72
      $region71: #{attention_forward.1} parent=5 // pred_region
        %s1022 = ssub.s32 %s19, 2
        // Predicated region
        $region73: #{attention_forward.1} parent=71 // pred_check
          %p1023 = pneg %p172
        $region74: #{attention_forward.1} parent=71 // pred_check_branch
          %1025 = sbr.rel (%p1023) target = $region76
        $region75: #{attention_forward.1} parent=71 // pred_region
          %s1026 = sand.u32 %s157, 1
          %s1027 = scalar_lea.sflag [#allocation6], %s1026
          %s1028 = sand.u32 %s157, 1
          %s1029 = smul.addr %s1028, 8
          %s1030 = scalar_lea.vmem [#allocation13], %s1029
          %1031 = dma.done %s1027, 128
        $region76: #{attention_forward.1} parent=71 // pred_fallthru
          _
      $region72: #{attention_forward.1} parent=5 // pred_fallthru
        _
    $region6: #{attention_forward.1} parent=1 // loop_footer
      %s23 = sadd.s32 1, %s19
    $region7: #{attention_forward.1} parent=1 // loop_footer_branch
      %18 = sbr.rel target = $region3
    $region8: #{attention_forward.1} parent=1 // loop_exit
      _
    %1032 = vsyncpa [#allocation5], 1
    %s1033 = scalar_lea.sflag [#allocation5], 1
    %1034 = vsyncpa %s1033, 1
    %1035 = vsyncpa [#allocation8], 1
    %1036 = vsyncpa [#allocation11], 1
    %1037 = vsyncpa [#allocation6], 1
    %s1038 = scalar_lea.sflag [#allocation6], 1
    %1039 = vsyncpa %s1038, 1

</llo_original>
